<compile_context>
chip_gen: v7x
topology: tpu7x:2x2x1
jax: 0.10.0
libtpu: 0.0.40
codegen_flags: <defaults>
</compile_context>

<pallas_src>
import functools

import jax
import jax.numpy as jnp
from jax.experimental import pallas as pl
from jax.experimental.pallas import tpu as pltpu


def _add_pos_enc_kernel(x_ref, pe_ref, o_ref):
    # x_ref/o_ref: (TS, E) tile for one batch element (batch dim squeezed out).
    # pe_ref:      (TS, E) positional-encoding tile (resident across the inner
    #              batch axis, re-fetched only when the tile index changes).
    # Straight vreg-for-vreg VPU add; no broadcast/reshape in the body.
    o_ref[...] = (x_ref[...] + pe_ref[...]).astype(o_ref.dtype)


def make_pos_enc(embed_size: int, max_seq_len: int, dtype=jnp.float32) -> jnp.ndarray:
    """Deterministic buffer init, mirroring PositionalEncoding.__init__.

    Build the buffer in the activation dtype here (init-time) so the jitted
    forward never pays a full-buffer astype per call.
    """
    position = jnp.arange(0, max_seq_len, dtype=jnp.float32)[:, None]       # (S, 1)
    div_term = jnp.exp(
        jnp.arange(0, embed_size, 2, dtype=jnp.float32)
        * -(jnp.log(10000.0) / embed_size)
    )                                                                        # (E/2,)
    angles = position * div_term                                             # (S, E/2)
    pe = jnp.zeros((max_seq_len, embed_size), dtype=jnp.float32)
    pe = pe.at[:, 0::2].set(jnp.sin(angles))
    pe = pe.at[:, 1::2].set(jnp.cos(angles))
    return pe.astype(dtype)


def _round_up(n: int, m: int) -> int:
    return ((n + m - 1) // m) * m


@functools.partial(jax.jit, static_argnames=("seq_tile",))
def positional_encoding_forward(x: jnp.ndarray, pos_enc: jnp.ndarray,
                                *, seq_tile: int = 1024) -> jnp.ndarray:
    """x: (B, S, E); pos_enc: (max_seq_len, E). Returns x + pos_enc[:S]."""
    B, S, E = x.shape
    max_seq_len = pos_enc.shape[0]
    assert pos_enc.shape[1] == E and max_seq_len >= S

    # Fallback cast (no-op when the caller built pos_enc in x.dtype at init,
    # which is the recommended path).
    pe = pos_enc if pos_enc.dtype == x.dtype else pos_enc.astype(x.dtype)

    itemsize = jnp.dtype(x.dtype).itemsize
    # Sublane-packing multiple: 8 rows for f32, 16 for bf16/f16, 32 for int8.
    sub = 8 * max(1, 4 // itemsize)
    # Sequence tile: a multiple of `sub`; full E stays as the lane axis
    # (E=512 is a multiple of 128, so stores are full unmasked vst).
    # Note: if E < 128, a lane-dense reshape to (B, S*E) in the wrapper would
    # be the bigger lever; not needed for the module's E=512.
    ts = min(_round_up(seq_tile, sub), _round_up(S, sub))
    num_tiles = pl.cdiv(S, ts)

    # With the tile axis outer / batch inner, PE is fetched once per tile.
    cost = pl.CostEstimate(
        flops=B * S * E,
        transcendentals=0,
        bytes_accessed=(2 * B * S * E + S * E) * itemsize,
    )

    # Double-buffered block footprint (x, pe, out).  Only override the scoped
    # VMEM limit when the default (16 MiB on v5e) would not fit.
    block_bytes = ts * E * itemsize
    vmem_needed = 3 * 2 * block_bytes
    vmem_limit = vmem_needed + (4 << 20) if vmem_needed > (16 << 20) else None

    return pl.pallas_call(
        _add_pos_enc_kernel,
        out_shape=jax.ShapeDtypeStruct((B, S, E), x.dtype),
        grid_spec=pltpu.PrefetchScalarGridSpec(
            num_scalar_prefetch=0,
            # Tile axis OUTER, batch INNER: PE block index is constant across
            # consecutive (inner) batch steps -> PE tile stays VMEM-resident.
            grid=(num_tiles, B),
            in_specs=[
                # Batch dim squeezed -> kernel sees 2-D (ts, E) refs.
                pl.BlockSpec((pl.Squeezed(), ts, E), lambda t, b: (b, t, 0)),
                # Full PE buffer passed in; index_map picks row-tiles directly
                # (no wrapper-side slice copy of the buffer).
                pl.BlockSpec((ts, E), lambda t, b: (t, 0)),
            ],
            out_specs=pl.BlockSpec((pl.Squeezed(), ts, E), lambda t, b: (b, t, 0)),
        ),
        compiler_params=pltpu.CompilerParams(
            # Both axes independent -> shardable across v7x's 2 TensorCores.
            dimension_semantics=("parallel", "parallel"),
            vmem_limit_bytes=vmem_limit,
        ),
        cost_estimate=cost,
    )(x, pe)


if __name__ == "__main__":
    # Shapes from the PyTorch spec (embed_size=512, seq_len=300); PE buffer
    # kept at 512 rows (module default is 5000) so the demo stays small while
    # still exercising S < max_seq_len and a partial last sequence tile.
    embed_size = 512
    seq = 300
    max_seq_len = 512
    batch = 2

    key = jax.random.PRNGKey(0)
    x = jax.random.normal(key, (batch, seq, embed_size), dtype=jnp.float32)
    # Build PE in the activation dtype at init (no per-call cast in forward).
    pos_enc = make_pos_enc(embed_size, max_seq_len, dtype=x.dtype)

    # Default seq_tile=1024 -> one 304-row tile per batch element (grid (1, 2)).
    out = positional_encoding_forward(x, pos_enc)
    out = jax.block_until_ready(out)

    # Reference check (plain JAX), same semantics as the PyTorch forward.
    ref = x + pos_enc[None, :seq, :]
    assert out.shape == (batch, seq, embed_size)
    assert jnp.allclose(out, ref, atol=1e-6, rtol=1e-6)

    print("KERNEL_OK")
</pallas_src>

<mosaic_0001>
module attributes {stable_mosaic.version = 11 : i64} {
  func.func @_add_pos_enc_kernel(%arg0: i32, %arg1: i32, %arg2: memref<1x304x512xf32, #tpu.memory_space<vmem>>, %arg3: memref<304x512xf32, #tpu.memory_space<vmem>>, %arg4: memref<1x304x512xf32, #tpu.memory_space<vmem>>) attributes {dimension_semantics = [#tpu.dimension_semantics<parallel>, #tpu.dimension_semantics<parallel>], iteration_bounds = array<i64: 1, 2>, scalar_prefetch = 0 : i64, scratch_operands = 0 : i64, tpu.core_type = #tpu.core_type<tc>, window_params = [{transform_indices = @transform_0, window_bounds = array<i64: 1, 304, 512>}, {transform_indices = @transform_1, window_bounds = array<i64: 304, 512>}, {transform_indices = @transform_2, window_bounds = array<i64: 1, 304, 512>}]} {
    %c0 = arith.constant 0 : index
    %c0_0 = arith.constant 0 : index
    %c0_1 = arith.constant 0 : index
    %0 = vector.load %arg2[%c0, %c0_0, %c0_1] : memref<1x304x512xf32, #tpu.memory_space<vmem>>, vector<1x304x512xf32>
    %1 = vector.shape_cast %0 : vector<1x304x512xf32> to vector<304x512xf32>
    %c0_2 = arith.constant 0 : index
    %c0_3 = arith.constant 0 : index
    %2 = vector.load %arg3[%c0_2, %c0_3] : memref<304x512xf32, #tpu.memory_space<vmem>>, vector<304x512xf32>
    %3 = arith.addf %1, %2 : vector<304x512xf32>
    %c0_4 = arith.constant 0 : index
    %c0_5 = arith.constant 0 : index
    %c0_6 = arith.constant 0 : index
    %4 = vector.load %arg4[%c0_4, %c0_5, %c0_6] : memref<1x304x512xf32, #tpu.memory_space<vmem>>, vector<1x304x512xf32>
    %5 = vector.shape_cast %4 : vector<1x304x512xf32> to vector<304x512xf32>
    %6 = vector.shape_cast %3 : vector<304x512xf32> to vector<1x304x512xf32>
    tpu.vector_store %arg4[%c0_4, %c0_5, %c0_6], %6 {strides = array<i32>} : memref<1x304x512xf32, #tpu.memory_space<vmem>>, vector<1x304x512xf32>,
    return
  }
  func.func @transform_0(%arg0: i32, %arg1: i32) -> (i32, i32, i32) {
    %c0_i32 = arith.constant 0 : i32
    %c0_i32_0 = arith.constant 0 : i32
    return %arg1, %arg0, %c0_i32 : i32, i32, i32
  }
  func.func @transform_1(%arg0: i32, %arg1: i32) -> (i32, i32) {
    %c0_i32 = arith.constant 0 : i32
    %c0_i32_0 = arith.constant 0 : i32
    return %arg0, %c0_i32 : i32, i32
  }
  func.func @transform_2(%arg0: i32, %arg1: i32) -> (i32, i32, i32) {
    %c0_i32 = arith.constant 0 : i32
    %c0_i32_0 = arith.constant 0 : i32
    return %arg1, %arg0, %c0_i32 : i32, i32, i32
  }
}

</mosaic_0001>

<llo_original>
// kernel: positional_encoding_forward.1
$region0: #{positional_encoding_forward.1}
  #allocation0 [shape = 'u32[]', space=smem, size = 0x4, offset = 0x4, fixed_abs, tag = 'smem constant byte address 0x4 - core index']
  #allocation1 [shape = 'u32[144,128]{1,0:T(1,128)}', space=vmem, size = 0x12000, scoped, tag = 'internal scratch']
  %s0 = inlined_call_operand.vmem [shape: f32[2,300,512], index: 0, kind: input, shape index: {}]
  %s1 = inlined_call_operand.vmem [shape: f32[512,512], index: 1, kind: input, shape index: {}]
  %s2 = inlined_call_operand.vmem [shape: f32[2,300,512], index: 2, kind: output, shape index: {}]
  %s3 = sld [smem:[#allocation0]]
  $region41: #{positional_encoding_forward.1} parent=0
    _
  %s5 = ssub.s32 1, %s3
  %s6 = scalar_select 0, %s5, %s3
  loop: start=0, step=1, limit=4
  $region2: #{positional_encoding_forward.1} parent=0 // loop_pre_header
    _
  $region3: #{positional_encoding_forward.1} parent=0 // loop_header
    %s8 = sphi 0, %s12
    %p9 = scmp.ge.s32.totalorder %s8, 4
    %s15 = sphi 0, %s27
    %s16 = sphi 0, %s23
    %s17 = sphi 0, %s15
    %s18 = sphi 0, %s16
    %s19 = sphi 0, %s17
    %s20 = sphi 0, %s18
    %s32 = sphi 0, %s34
    %s35 = sphi 0, %s32
    %s36 = sphi 0, %s35
    %s52 = sphi 0, %s36
    %s58 = sphi 0, %s60
    %s61 = sphi 0, %s58
    %s62 = sphi 0, %s61
    %s78 = sphi 0, %s62
    %s86 = sphi 0, %s88
    %s89 = sphi 0, %s86
    %s90 = sphi 0, %s89
    %s106 = sphi 0, %s90
  $region4: #{positional_encoding_forward.1} parent=0 // loop_header_branch
    %11 = sbr.rel (%p9) target = $region8
  $region5: #{positional_encoding_forward.1} parent=0 // loop_body
    %s13 = ssub.s32 %s8, 1
    %s14 = ssub.s32 %s8, 2
    %s21 = sadd.s32 1, %s16
    %p22 = scmp.ge.s32.totalorder %s21, 2
    %s23 = scalar_select %p22, 0, %s21
    %s24 = sadd.s32 1, %s15
    %s25 = scalar_select %p22, %s24, %s15
    %p26 = scmp.ge.s32.totalorder %s25, 1
    %s27 = scalar_select %p26, 0, %s25
    %s28 = ssub.s32 %s16, %s23
    %s29 = ssub.s32 %s15, %s27
    %s30 = sor.u32 %s28, %s29
    %p31 = scmp.eq.s32.totalorder %s30, 0
    %s33 = sadd.s32 %s32, 1
    %s34 = scalar_select %p31, %s32, %s33
    %p37 = pneg %p31
    %p38 = scmp.eq.s32.totalorder %s8, 1
    %p39 = por %p37, %p38
    %p40 = scmp.ne.s32.totalorder %s32, %s35
    %p41 = scmp.eq.s32.totalorder %s8, 0
    %p42 = por %p40, %p41
    %p43 = scmp.ne.s32.totalorder %s32, %s35
    %p44 = scmp.eq.s32.totalorder %s13, 1
    %p45 = por %p43, %p44
    %p46 = scmp.ne.s32.totalorder %s35, %s36
    %p47 = scmp.eq.s32.totalorder %s13, 0
    %p48 = por %p46, %p47
    %p49 = scmp.ne.s32.totalorder %s35, %s36
    %p50 = scmp.eq.s32.totalorder %s14, 1
    %p51 = por %p49, %p50
    %p53 = scmp.ne.s32.totalorder %s36, %s52
    %p54 = scmp.eq.s32.totalorder %s14, 0
    %p55 = por %p53, %p54
    %s56 = ssub.s32 %s15, %s27
    %p57 = scmp.eq.s32.totalorder %s56, 0
    %s59 = sadd.s32 %s58, 1
    %s60 = scalar_select %p57, %s58, %s59
    %p63 = pneg %p57
    %p64 = scmp.eq.s32.totalorder %s8, 1
    %p65 = por %p63, %p64
    %p66 = scmp.ne.s32.totalorder %s58, %s61
    %p67 = scmp.eq.s32.totalorder %s8, 0
    %p68 = por %p66, %p67
    %p69 = scmp.ne.s32.totalorder %s58, %s61
    %p70 = scmp.eq.s32.totalorder %s13, 1
    %p71 = por %p69, %p70
    %p72 = scmp.ne.s32.totalorder %s61, %s62
    %p73 = scmp.eq.s32.totalorder %s13, 0
    %p74 = por %p72, %p73
    %p75 = scmp.ne.s32.totalorder %s61, %s62
    %p76 = scmp.eq.s32.totalorder %s14, 1
    %p77 = por %p75, %p76
    %p79 = scmp.ne.s32.totalorder %s62, %s78
    %p80 = scmp.eq.s32.totalorder %s14, 0
    %p81 = por %p79, %p80
    %s82 = ssub.s32 %s16, %s23
    %s83 = ssub.s32 %s15, %s27
    %s84 = sor.u32 %s82, %s83
    %p85 = scmp.eq.s32.totalorder %s84, 0
    %s87 = sadd.s32 %s86, 1
    %s88 = scalar_select %p85, %s86, %s87
    %p91 = pneg %p85
    %p92 = scmp.eq.s32.totalorder %s8, 1
    %p93 = por %p91, %p92
    %p94 = scmp.ne.s32.totalorder %s86, %s89
    %p95 = scmp.eq.s32.totalorder %s8, 0
    %p96 = por %p94, %p95
    %p97 = scmp.ne.s32.totalorder %s86, %s89
    %p98 = scmp.eq.s32.totalorder %s13, 1
    %p99 = por %p97, %p98
    %p100 = scmp.ne.s32.totalorder %s89, %s90
    %p101 = scmp.eq.s32.totalorder %s13, 0
    %p102 = por %p100, %p101
    %p103 = scmp.ne.s32.totalorder %s89, %s90
    %p104 = scmp.eq.s32.totalorder %s14, 1
    %p105 = por %p103, %p104
    %p107 = scmp.ne.s32.totalorder %s90, %s106
    %p108 = scmp.eq.s32.totalorder %s14, 0
    %p109 = por %p107, %p108
    %p110 = scmp.le.s32.totalorder 1, %s8
    %p111 = scmp.lt.s32.totalorder %s8, 3
    %p112 = pnand %p110, %p111
    %p113 = pneg %p112
    // Predicated region
    $region9: #{positional_encoding_forward.1} parent=5 // pred_check
      _
    $region10: #{positional_encoding_forward.1} parent=5 // pred_check_branch
      %115 = sbr.rel (%p112) target = $region12
    $region11: #{positional_encoding_forward.1} parent=5 // pred_region
      %s116 = ssub.s32 %s8, 1
      // Predicated region
      $region13: #{positional_encoding_forward.1} parent=11 // pred_check
        %p117 = pneg %p74
      $region14: #{positional_encoding_forward.1} parent=11 // pred_check_branch
        %119 = sbr.rel (%p117) target = $region16
      $region15: #{positional_encoding_forward.1} parent=11 // pred_region
        %s120 = smul.u32 38, %s17
        %s121 = ssub.s32 64, %s120
        %p122 = scmp.lt.s32.totalorder %s121, 38
        %s123 = scalar_select %p122, %s121, 38
        %s124 = smul.u32 128, %s123
        %s125 = smul.u32 %s124, 4
        %p126 = scmp.lt.s32.totalorder %s120, 63
        %s127 = scalar_select %p126, %s120, 63
        %s128 = smul.addr %s127, 4
        %s129 = smul.addr %s128, 8
        %s130 = scalar_lea.vmem %s1, %s129
        %s131 = smul.u32 38, %s17
        %s132 = ssub.s32 64, %s131
        %p133 = scmp.lt.s32.totalorder %s132, 38
        %s134 = scalar_select %p133, %s132, 38
        %s135 = smul.u32 128, %s134
        %s136 = smul.u32 %s135, 4
      $region16: #{positional_encoding_forward.1} parent=11 // pred_fallthru
        _
    $region12: #{positional_encoding_forward.1} parent=5 // pred_fallthru
      _
    %p137 = scmp.lt.s32.totalorder %s8, 2
    // Predicated region
    $region17: #{positional_encoding_forward.1} parent=5 // pred_check
      %p138 = pneg %p137
    $region18: #{positional_encoding_forward.1} parent=5 // pred_check_branch
      %140 = sbr.rel (%p138) target = $region20
    $region19: #{positional_encoding_forward.1} parent=5 // pred_region
      // Predicated region
      $region21: #{positional_encoding_forward.1} parent=19 // pred_check
        %p141 = pneg %p42
      $region22: #{positional_encoding_forward.1} parent=19 // pred_check_branch
        %143 = sbr.rel (%p141) target = $region24
      $region23: #{positional_encoding_forward.1} parent=19 // pred_region
        %s144 = smul.u32 38, %s15
        %p145 = scmp.lt.s32.totalorder %s16, 1
        %s146 = scalar_select %p145, %s16, 1
        %p147 = scmp.lt.s32.totalorder %s144, 37
        %s148 = scalar_select %p147, %s144, 37
        %s149 = smul.addr %s148, 4
        %s150 = smul.addr %s146, 152
        %s151 = sadd.s32 %s149, %s150
        %s152 = smul.addr %s151, 8
        %s153 = scalar_lea.vmem %s0, %s152
        %s154 = smul.u32 38, %s15
      $region24: #{positional_encoding_forward.1} parent=19 // pred_fallthru
        _
    $region20: #{positional_encoding_forward.1} parent=5 // pred_fallthru
      _
    %p155 = scmp.le.s32.totalorder 1, %s8
    %p156 = scmp.lt.s32.totalorder %s8, 3
    %p157 = pnand %p155, %p156
    %p158 = pneg %p157
    // Predicated region
    $region25: #{positional_encoding_forward.1} parent=5 // pred_check
      _
    $region26: #{positional_encoding_forward.1} parent=5 // pred_check_branch
      %160 = sbr.rel (%p157) target = $region28
    $region27: #{positional_encoding_forward.1} parent=5 // pred_region
      %s161 = ssub.s32 %s8, 1
      %s162 = smul.u32 38, %s17
      %p163 = scmp.lt.s32.totalorder %s18, 1
      %s164 = scalar_select %p163, %s18, 1
      %p165 = scmp.lt.s32.totalorder %s162, 37
      %s166 = scalar_select %p165, %s162, 37
      %s167 = smul.addr %s166, 4
      %s168 = smul.addr %s164, 152
      %s169 = sadd.s32 %s167, %s168
      %s170 = smul.addr %s169, 8
      %s171 = scalar_lea.vmem %s0, %s170
      %p172 = pneg %p48
      %p173 = pneg %p45
      %s174 = smul.u32 38, %s17
      %s175 = ssub.s32 64, %s174
      %p176 = scmp.lt.s32.totalorder %s175, 38
      %s177 = scalar_select %p176, %s175, 38
      %s178 = smul.u32 128, %s177
      %s179 = smul.u32 %s178, 4
      %p180 = scmp.lt.s32.totalorder %s174, 63
      %s181 = scalar_select %p180, %s174, 63
      %s182 = smul.addr %s181, 4
      %s183 = smul.addr %s182, 8
      %s184 = scalar_lea.vmem %s1, %s183
      %p185 = pneg %p74
      %p186 = pneg %p71
      %p187 = pneg %p102
      %p188 = pneg %p99
      %s189 = smul.u32 38, %s17
      %p190 = scmp.lt.s32.totalorder %s18, 1
      %s191 = scalar_select %p190, %s18, 1
      %p192 = scmp.lt.s32.totalorder %s189, 37
      %s193 = scalar_select %p192, %s189, 37
      %s194 = smul.addr %s193, 4
      %s195 = smul.addr %s191, 152
      %s196 = sadd.s32 %s194, %s195
      %s197 = smul.addr %s196, 8
      %s198 = scalar_lea.vmem %s2, %s197
      %s199 = smul.u32 38, %s17
      %p200 = scmp.lt.s32.totalorder %s18, 1
      %s201 = scalar_select %p200, %s18, 1
      %p202 = scmp.lt.s32.totalorder %s199, 37
      %s203 = scalar_select %p202, %s199, 37
      %s204 = smul.addr %s203, 4
      %s205 = smul.addr %s201, 152
      %s206 = sadd.s32 %s204, %s205
      %s207 = smul.addr %s206, 8
      %s208 = scalar_lea.vmem %s0, %s207
      %s209 = smul.u32 38, %s17
      %s210 = smul.u32 38, %s17
      %s211 = ssub.s32 64, %s210
      %p212 = scmp.lt.s32.totalorder %s211, 38
      %s213 = scalar_select %p212, %s211, 38
      %s214 = smul.u32 128, %s213
      %s215 = smul.u32 %s214, 4
      %p216 = scmp.lt.s32.totalorder %s210, 63
      %s217 = scalar_select %p216, %s210, 63
      %s218 = smul.addr %s217, 4
      %s219 = smul.addr %s218, 8
      %s220 = scalar_lea.vmem %s1, %s219
      %s221 = smul.u32 38, %s17
      %s222 = ssub.s32 64, %s221
      %p223 = scmp.lt.s32.totalorder %s222, 38
      %s224 = scalar_select %p223, %s222, 38
      %s225 = smul.u32 128, %s224
      %s226 = smul.u32 %s225, 4
      %s227 = smul.u32 38, %s17
      %p228 = scmp.lt.s32.totalorder %s18, 1
      %s229 = scalar_select %p228, %s18, 1
      %p230 = scmp.lt.s32.totalorder %s227, 37
      %s231 = scalar_select %p230, %s227, 37
      %s232 = smul.addr %s231, 4
      %s233 = smul.addr %s229, 152
      %s234 = sadd.s32 %s232, %s233
      %s235 = smul.addr %s234, 8
      %s236 = scalar_lea.vmem %s2, %s235
      %s237 = smul.u32 38, %s17
      %v238 = vld [vmem:[%s208] sm:$0xff]
      %v239 = vld [vmem:[%s208 + $0x8] sm:$0xff]
      %v240 = vld [vmem:[%s208 + $0x10] sm:$0xff]
      %v241 = vld [vmem:[%s208 + $0x18] sm:$0xff]
      %v242 = vld [vmem:[%s208 + $0x20] sm:$0xff]
      %v243 = vld [vmem:[%s208 + $0x28] sm:$0xff]
      %v244 = vld [vmem:[%s208 + $0x30] sm:$0xff]
      %v245 = vld [vmem:[%s208 + $0x38] sm:$0xff]
      %v246 = vld [vmem:[%s208 + $0x40] sm:$0xff]
      %v247 = vld [vmem:[%s208 + $0x48] sm:$0xff]
      %v248 = vld [vmem:[%s208 + $0x50] sm:$0xff]
      %v249 = vld [vmem:[%s208 + $0x58] sm:$0xff]
      %v250 = vld [vmem:[%s208 + $0x60] sm:$0xff]
      %v251 = vld [vmem:[%s208 + $0x68] sm:$0xff]
      %v252 = vld [vmem:[%s208 + $0x70] sm:$0xff]
      %v253 = vld [vmem:[%s208 + $0x78] sm:$0xff]
      %v254 = vld [vmem:[%s208 + $0x80] sm:$0xff]
      %v255 = vld [vmem:[%s208 + $0x88] sm:$0xff]
      %v256 = vld [vmem:[%s208 + $0x90] sm:$0xff]
      %v257 = vld [vmem:[%s208 + $0x98] sm:$0xff]
      %v258 = vld [vmem:[%s208 + $0xa0] sm:$0xff]
      %v259 = vld [vmem:[%s208 + $0xa8] sm:$0xff]
      %v260 = vld [vmem:[%s208 + $0xb0] sm:$0xff]
      %v261 = vld [vmem:[%s208 + $0xb8] sm:$0xff]
      %v262 = vld [vmem:[%s208 + $0xc0] sm:$0xff]
      %v263 = vld [vmem:[%s208 + $0xc8] sm:$0xff]
      %v264 = vld [vmem:[%s208 + $0xd0] sm:$0xff]
      %v265 = vld [vmem:[%s208 + $0xd8] sm:$0xff]
      %v266 = vld [vmem:[%s208 + $0xe0] sm:$0xff]
      %v267 = vld [vmem:[%s208 + $0xe8] sm:$0xff]
      %v268 = vld [vmem:[%s208 + $0xf0] sm:$0xff]
      %v269 = vld [vmem:[%s208 + $0xf8] sm:$0xff]
      %v270 = vld [vmem:[%s208 + $0x100] sm:$0xff]
      %v271 = vld [vmem:[%s208 + $0x108] sm:$0xff]
      %v272 = vld [vmem:[%s208 + $0x110] sm:$0xff]
      %v273 = vld [vmem:[%s208 + $0x118] sm:$0xff]
      %v274 = vld [vmem:[%s208 + $0x120] sm:$0xff]
      %v275 = vld [vmem:[%s208 + $0x128] sm:$0xff]
      %v276 = vld [vmem:[%s208 + $0x130] sm:$0xff]
      %v277 = vld [vmem:[%s208 + $0x138] sm:$0xff]
      %v278 = vld [vmem:[%s208 + $0x140] sm:$0xff]
      %v279 = vld [vmem:[%s208 + $0x148] sm:$0xff]
      %v280 = vld [vmem:[%s208 + $0x150] sm:$0xff]
      %v281 = vld [vmem:[%s208 + $0x158] sm:$0xff]
      %v282 = vld [vmem:[%s208 + $0x160] sm:$0xff]
      %v283 = vld [vmem:[%s208 + $0x168] sm:$0xff]
      %v284 = vld [vmem:[%s208 + $0x170] sm:$0xff]
      %v285 = vld [vmem:[%s208 + $0x178] sm:$0xff]
      %v286 = vld [vmem:[%s208 + $0x180] sm:$0xff]
      %v287 = vld [vmem:[%s208 + $0x188] sm:$0xff]
      %v288 = vld [vmem:[%s208 + $0x190] sm:$0xff]
      %v289 = vld [vmem:[%s208 + $0x198] sm:$0xff]
      %v290 = vld [vmem:[%s208 + $0x1a0] sm:$0xff]
      %v291 = vld [vmem:[%s208 + $0x1a8] sm:$0xff]
      %v292 = vld [vmem:[%s208 + $0x1b0] sm:$0xff]
      %v293 = vld [vmem:[%s208 + $0x1b8] sm:$0xff]
      %v294 = vld [vmem:[%s208 + $0x1c0] sm:$0xff]
      %v295 = vld [vmem:[%s208 + $0x1c8] sm:$0xff]
      %v296 = vld [vmem:[%s208 + $0x1d0] sm:$0xff]
      %v297 = vld [vmem:[%s208 + $0x1d8] sm:$0xff]
      %v298 = vld [vmem:[%s208 + $0x1e0] sm:$0xff]
      %v299 = vld [vmem:[%s208 + $0x1e8] sm:$0xff]
      %v300 = vld [vmem:[%s208 + $0x1f0] sm:$0xff]
      %v301 = vld [vmem:[%s208 + $0x1f8] sm:$0xff]
      %v302 = vld [vmem:[%s208 + $0x200] sm:$0xff]
      %v303 = vld [vmem:[%s208 + $0x208] sm:$0xff]
      %v304 = vld [vmem:[%s208 + $0x210] sm:$0xff]
      %v305 = vld [vmem:[%s208 + $0x218] sm:$0xff]
      %v306 = vld [vmem:[%s208 + $0x220] sm:$0xff]
      %v307 = vld [vmem:[%s208 + $0x228] sm:$0xff]
      %v308 = vld [vmem:[%s208 + $0x230] sm:$0xff]
      %v309 = vld [vmem:[%s208 + $0x238] sm:$0xff]
      %v310 = vld [vmem:[%s208 + $0x240] sm:$0xff]
      %v311 = vld [vmem:[%s208 + $0x248] sm:$0xff]
      %v312 = vld [vmem:[%s208 + $0x250] sm:$0xff]
      %v313 = vld [vmem:[%s208 + $0x258] sm:$0xff]
      %v314 = vld [vmem:[%s208 + $0x260] sm:$0xff]
      %v315 = vld [vmem:[%s208 + $0x268] sm:$0xff]
      %v316 = vld [vmem:[%s208 + $0x270] sm:$0xff]
      %v317 = vld [vmem:[%s208 + $0x278] sm:$0xff]
      %v318 = vld [vmem:[%s208 + $0x280] sm:$0xff]
      %v319 = vld [vmem:[%s208 + $0x288] sm:$0xff]
      %v320 = vld [vmem:[%s208 + $0x290] sm:$0xff]
      %v321 = vld [vmem:[%s208 + $0x298] sm:$0xff]
      %v322 = vld [vmem:[%s208 + $0x2a0] sm:$0xff]
      %v323 = vld [vmem:[%s208 + $0x2a8] sm:$0xff]
      %v324 = vld [vmem:[%s208 + $0x2b0] sm:$0xff]
      %v325 = vld [vmem:[%s208 + $0x2b8] sm:$0xff]
      %v326 = vld [vmem:[%s208 + $0x2c0] sm:$0xff]
      %v327 = vld [vmem:[%s208 + $0x2c8] sm:$0xff]
      %v328 = vld [vmem:[%s208 + $0x2d0] sm:$0xff]
      %v329 = vld [vmem:[%s208 + $0x2d8] sm:$0xff]
      %v330 = vld [vmem:[%s208 + $0x2e0] sm:$0xff]
      %v331 = vld [vmem:[%s208 + $0x2e8] sm:$0xff]
      %v332 = vld [vmem:[%s208 + $0x2f0] sm:$0xff]
      %v333 = vld [vmem:[%s208 + $0x2f8] sm:$0xff]
      %v334 = vld [vmem:[%s208 + $0x300] sm:$0xff]
      %v335 = vld [vmem:[%s208 + $0x308] sm:$0xff]
      %v336 = vld [vmem:[%s208 + $0x310] sm:$0xff]
      %v337 = vld [vmem:[%s208 + $0x318] sm:$0xff]
      %v338 = vld [vmem:[%s208 + $0x320] sm:$0xff]
      %v339 = vld [vmem:[%s208 + $0x328] sm:$0xff]
      %v340 = vld [vmem:[%s208 + $0x330] sm:$0xff]
      %v341 = vld [vmem:[%s208 + $0x338] sm:$0xff]
      %v342 = vld [vmem:[%s208 + $0x340] sm:$0xff]
      %v343 = vld [vmem:[%s208 + $0x348] sm:$0xff]
      %v344 = vld [vmem:[%s208 + $0x350] sm:$0xff]
      %v345 = vld [vmem:[%s208 + $0x358] sm:$0xff]
      %v346 = vld [vmem:[%s208 + $0x360] sm:$0xff]
      %v347 = vld [vmem:[%s208 + $0x368] sm:$0xff]
      %v348 = vld [vmem:[%s208 + $0x370] sm:$0xff]
      %v349 = vld [vmem:[%s208 + $0x378] sm:$0xff]
      %v350 = vld [vmem:[%s208 + $0x380] sm:$0xff]
      %v351 = vld [vmem:[%s208 + $0x388] sm:$0xff]
      %v352 = vld [vmem:[%s208 + $0x390] sm:$0xff]
      %v353 = vld [vmem:[%s208 + $0x398] sm:$0xff]
      %v354 = vld [vmem:[%s208 + $0x3a0] sm:$0xff]
      %v355 = vld [vmem:[%s208 + $0x3a8] sm:$0xff]
      %v356 = vld [vmem:[%s208 + $0x3b0] sm:$0xff]
      %v357 = vld [vmem:[%s208 + $0x3b8] sm:$0xff]
      %v358 = vld [vmem:[%s208 + $0x3c0] sm:$0xff]
      %v359 = vld [vmem:[%s208 + $0x3c8] sm:$0xff]
      %v360 = vld [vmem:[%s208 + $0x3d0] sm:$0xff]
      %v361 = vld [vmem:[%s208 + $0x3d8] sm:$0xff]
      %v362 = vld [vmem:[%s208 + $0x3e0] sm:$0xff]
      %v363 = vld [vmem:[%s208 + $0x3e8] sm:$0xff]
      %v364 = vld [vmem:[%s208 + $0x3f0] sm:$0xff]
      %v365 = vld [vmem:[%s208 + $0x3f8] sm:$0xff]
      %v366 = vld [vmem:[%s208 + $0x400] sm:$0xff]
      %v367 = vld [vmem:[%s208 + $0x408] sm:$0xff]
      %v368 = vld [vmem:[%s208 + $0x410] sm:$0xff]
      %v369 = vld [vmem:[%s208 + $0x418] sm:$0xff]
      %v370 = vld [vmem:[%s208 + $0x420] sm:$0xff]
      %v371 = vld [vmem:[%s208 + $0x428] sm:$0xff]
      %v372 = vld [vmem:[%s208 + $0x430] sm:$0xff]
      %v373 = vld [vmem:[%s208 + $0x438] sm:$0xff]
      %v374 = vld [vmem:[%s208 + $0x440] sm:$0xff]
      %v375 = vld [vmem:[%s208 + $0x448] sm:$0xff]
      %v376 = vld [vmem:[%s208 + $0x450] sm:$0xff]
      %v377 = vld [vmem:[%s208 + $0x458] sm:$0xff]
      %v378 = vld [vmem:[%s208 + $0x460] sm:$0xff]
      %v379 = vld [vmem:[%s208 + $0x468] sm:$0xff]
      %v380 = vld [vmem:[%s208 + $0x470] sm:$0xff]
      %v381 = vld [vmem:[%s208 + $0x478] sm:$0xff]
      %v382 = vld [vmem:[%s208 + $0x480] sm:$0xff]
      %v383 = vld [vmem:[%s208 + $0x488] sm:$0xff]
      %v384 = vld [vmem:[%s208 + $0x490] sm:$0xff]
      %v385 = vld [vmem:[%s208 + $0x498] sm:$0xff]
      %v386 = vld [vmem:[%s208 + $0x4a0] sm:$0xff]
      %v387 = vld [vmem:[%s208 + $0x4a8] sm:$0xff]
      %v388 = vld [vmem:[%s208 + $0x4b0] sm:$0xff]
      %v389 = vld [vmem:[%s208 + $0x4b8] sm:$0xff]
      %v390 = vld [vmem:[%s220] sm:$0xff]
      %v391 = vld [vmem:[%s220 + $0x8] sm:$0xff]
      %v392 = vld [vmem:[%s220 + $0x10] sm:$0xff]
      %v393 = vld [vmem:[%s220 + $0x18] sm:$0xff]
      %v394 = vld [vmem:[%s220 + $0x20] sm:$0xff]
      %v395 = vld [vmem:[%s220 + $0x28] sm:$0xff]
      %v396 = vld [vmem:[%s220 + $0x30] sm:$0xff]
      %v397 = vld [vmem:[%s220 + $0x38] sm:$0xff]
      %v398 = vld [vmem:[%s220 + $0x40] sm:$0xff]
      %v399 = vld [vmem:[%s220 + $0x48] sm:$0xff]
      %v400 = vld [vmem:[%s220 + $0x50] sm:$0xff]
      %v401 = vld [vmem:[%s220 + $0x58] sm:$0xff]
      %v402 = vld [vmem:[%s220 + $0x60] sm:$0xff]
      %v403 = vld [vmem:[%s220 + $0x68] sm:$0xff]
      %v404 = vld [vmem:[%s220 + $0x70] sm:$0xff]
      %v405 = vld [vmem:[%s220 + $0x78] sm:$0xff]
      %v406 = vld [vmem:[%s220 + $0x80] sm:$0xff]
      %v407 = vld [vmem:[%s220 + $0x88] sm:$0xff]
      %v408 = vld [vmem:[%s220 + $0x90] sm:$0xff]
      %v409 = vld [vmem:[%s220 + $0x98] sm:$0xff]
      %v410 = vld [vmem:[%s220 + $0xa0] sm:$0xff]
      %v411 = vld [vmem:[%s220 + $0xa8] sm:$0xff]
      %v412 = vld [vmem:[%s220 + $0xb0] sm:$0xff]
      %v413 = vld [vmem:[%s220 + $0xb8] sm:$0xff]
      %v414 = vld [vmem:[%s220 + $0xc0] sm:$0xff]
      %v415 = vld [vmem:[%s220 + $0xc8] sm:$0xff]
      %v416 = vld [vmem:[%s220 + $0xd0] sm:$0xff]
      %v417 = vld [vmem:[%s220 + $0xd8] sm:$0xff]
      %v418 = vld [vmem:[%s220 + $0xe0] sm:$0xff]
      %v419 = vld [vmem:[%s220 + $0xe8] sm:$0xff]
      %v420 = vld [vmem:[%s220 + $0xf0] sm:$0xff]
      %v421 = vld [vmem:[%s220 + $0xf8] sm:$0xff]
      %v422 = vld [vmem:[%s220 + $0x100] sm:$0xff]
      %v423 = vld [vmem:[%s220 + $0x108] sm:$0xff]
      %v424 = vld [vmem:[%s220 + $0x110] sm:$0xff]
      %v425 = vld [vmem:[%s220 + $0x118] sm:$0xff]
      %v426 = vld [vmem:[%s220 + $0x120] sm:$0xff]
      %v427 = vld [vmem:[%s220 + $0x128] sm:$0xff]
      %v428 = vld [vmem:[%s220 + $0x130] sm:$0xff]
      %v429 = vld [vmem:[%s220 + $0x138] sm:$0xff]
      %v430 = vld [vmem:[%s220 + $0x140] sm:$0xff]
      %v431 = vld [vmem:[%s220 + $0x148] sm:$0xff]
      %v432 = vld [vmem:[%s220 + $0x150] sm:$0xff]
      %v433 = vld [vmem:[%s220 + $0x158] sm:$0xff]
      %v434 = vld [vmem:[%s220 + $0x160] sm:$0xff]
      %v435 = vld [vmem:[%s220 + $0x168] sm:$0xff]
      %v436 = vld [vmem:[%s220 + $0x170] sm:$0xff]
      %v437 = vld [vmem:[%s220 + $0x178] sm:$0xff]
      %v438 = vld [vmem:[%s220 + $0x180] sm:$0xff]
      %v439 = vld [vmem:[%s220 + $0x188] sm:$0xff]
      %v440 = vld [vmem:[%s220 + $0x190] sm:$0xff]
      %v441 = vld [vmem:[%s220 + $0x198] sm:$0xff]
      %v442 = vld [vmem:[%s220 + $0x1a0] sm:$0xff]
      %v443 = vld [vmem:[%s220 + $0x1a8] sm:$0xff]
      %v444 = vld [vmem:[%s220 + $0x1b0] sm:$0xff]
      %v445 = vld [vmem:[%s220 + $0x1b8] sm:$0xff]
      %v446 = vld [vmem:[%s220 + $0x1c0] sm:$0xff]
      %v447 = vld [vmem:[%s220 + $0x1c8] sm:$0xff]
      %v448 = vld [vmem:[%s220 + $0x1d0] sm:$0xff]
      %v449 = vld [vmem:[%s220 + $0x1d8] sm:$0xff]
      %v450 = vld [vmem:[%s220 + $0x1e0] sm:$0xff]
      %v451 = vld [vmem:[%s220 + $0x1e8] sm:$0xff]
      %v452 = vld [vmem:[%s220 + $0x1f0] sm:$0xff]
      %v453 = vld [vmem:[%s220 + $0x1f8] sm:$0xff]
      %v454 = vld [vmem:[%s220 + $0x200] sm:$0xff]
      %v455 = vld [vmem:[%s220 + $0x208] sm:$0xff]
      %v456 = vld [vmem:[%s220 + $0x210] sm:$0xff]
      %v457 = vld [vmem:[%s220 + $0x218] sm:$0xff]
      %v458 = vld [vmem:[%s220 + $0x220] sm:$0xff]
      %v459 = vld [vmem:[%s220 + $0x228] sm:$0xff]
      %v460 = vld [vmem:[%s220 + $0x230] sm:$0xff]
      %v461 = vld [vmem:[%s220 + $0x238] sm:$0xff]
      %v462 = vld [vmem:[%s220 + $0x240] sm:$0xff]
      %v463 = vld [vmem:[%s220 + $0x248] sm:$0xff]
      %v464 = vld [vmem:[%s220 + $0x250] sm:$0xff]
      %v465 = vld [vmem:[%s220 + $0x258] sm:$0xff]
      %v466 = vld [vmem:[%s220 + $0x260] sm:$0xff]
      %v467 = vld [vmem:[%s220 + $0x268] sm:$0xff]
      %v468 = vld [vmem:[%s220 + $0x270] sm:$0xff]
      %v469 = vld [vmem:[%s220 + $0x278] sm:$0xff]
      %v470 = vld [vmem:[%s220 + $0x280] sm:$0xff]
      %v471 = vld [vmem:[%s220 + $0x288] sm:$0xff]
      %v472 = vld [vmem:[%s220 + $0x290] sm:$0xff]
      %v473 = vld [vmem:[%s220 + $0x298] sm:$0xff]
      %v474 = vld [vmem:[%s220 + $0x2a0] sm:$0xff]
      %v475 = vld [vmem:[%s220 + $0x2a8] sm:$0xff]
      %v476 = vld [vmem:[%s220 + $0x2b0] sm:$0xff]
      %v477 = vld [vmem:[%s220 + $0x2b8] sm:$0xff]
      %v478 = vld [vmem:[%s220 + $0x2c0] sm:$0xff]
      %v479 = vld [vmem:[%s220 + $0x2c8] sm:$0xff]
      %v480 = vld [vmem:[%s220 + $0x2d0] sm:$0xff]
      %v481 = vld [vmem:[%s220 + $0x2d8] sm:$0xff]
      %v482 = vld [vmem:[%s220 + $0x2e0] sm:$0xff]
      %v483 = vld [vmem:[%s220 + $0x2e8] sm:$0xff]
      %v484 = vld [vmem:[%s220 + $0x2f0] sm:$0xff]
      %v485 = vld [vmem:[%s220 + $0x2f8] sm:$0xff]
      %v486 = vld [vmem:[%s220 + $0x300] sm:$0xff]
      %v487 = vld [vmem:[%s220 + $0x308] sm:$0xff]
      %v488 = vld [vmem:[%s220 + $0x310] sm:$0xff]
      %v489 = vld [vmem:[%s220 + $0x318] sm:$0xff]
      %v490 = vld [vmem:[%s220 + $0x320] sm:$0xff]
      %v491 = vld [vmem:[%s220 + $0x328] sm:$0xff]
      %v492 = vld [vmem:[%s220 + $0x330] sm:$0xff]
      %v493 = vld [vmem:[%s220 + $0x338] sm:$0xff]
      %v494 = vld [vmem:[%s220 + $0x340] sm:$0xff]
      %v495 = vld [vmem:[%s220 + $0x348] sm:$0xff]
      %v496 = vld [vmem:[%s220 + $0x350] sm:$0xff]
      %v497 = vld [vmem:[%s220 + $0x358] sm:$0xff]
      %v498 = vld [vmem:[%s220 + $0x360] sm:$0xff]
      %v499 = vld [vmem:[%s220 + $0x368] sm:$0xff]
      %v500 = vld [vmem:[%s220 + $0x370] sm:$0xff]
      %v501 = vld [vmem:[%s220 + $0x378] sm:$0xff]
      %v502 = vld [vmem:[%s220 + $0x380] sm:$0xff]
      %v503 = vld [vmem:[%s220 + $0x388] sm:$0xff]
      %v504 = vld [vmem:[%s220 + $0x390] sm:$0xff]
      %v505 = vld [vmem:[%s220 + $0x398] sm:$0xff]
      %v506 = vld [vmem:[%s220 + $0x3a0] sm:$0xff]
      %v507 = vld [vmem:[%s220 + $0x3a8] sm:$0xff]
      %v508 = vld [vmem:[%s220 + $0x3b0] sm:$0xff]
      %v509 = vld [vmem:[%s220 + $0x3b8] sm:$0xff]
      %v510 = vld [vmem:[%s220 + $0x3c0] sm:$0xff]
      %v511 = vld [vmem:[%s220 + $0x3c8] sm:$0xff]
      %v512 = vld [vmem:[%s220 + $0x3d0] sm:$0xff]
      %v513 = vld [vmem:[%s220 + $0x3d8] sm:$0xff]
      %v514 = vld [vmem:[%s220 + $0x3e0] sm:$0xff]
      %v515 = vld [vmem:[%s220 + $0x3e8] sm:$0xff]
      %v516 = vld [vmem:[%s220 + $0x3f0] sm:$0xff]
      %v517 = vld [vmem:[%s220 + $0x3f8] sm:$0xff]
      %v518 = vld [vmem:[%s220 + $0x400] sm:$0xff]
      %v519 = vld [vmem:[%s220 + $0x408] sm:$0xff]
      %v520 = vld [vmem:[%s220 + $0x410] sm:$0xff]
      %v521 = vld [vmem:[%s220 + $0x418] sm:$0xff]
      %v522 = vld [vmem:[%s220 + $0x420] sm:$0xff]
      %v523 = vld [vmem:[%s220 + $0x428] sm:$0xff]
      %v524 = vld [vmem:[%s220 + $0x430] sm:$0xff]
      %v525 = vld [vmem:[%s220 + $0x438] sm:$0xff]
      %v526 = vld [vmem:[%s220 + $0x440] sm:$0xff]
      %v527 = vld [vmem:[%s220 + $0x448] sm:$0xff]
      %v528 = vld [vmem:[%s220 + $0x450] sm:$0xff]
      %v529 = vld [vmem:[%s220 + $0x458] sm:$0xff]
      %v530 = vld [vmem:[%s220 + $0x460] sm:$0xff]
      %v531 = vld [vmem:[%s220 + $0x468] sm:$0xff]
      %v532 = vld [vmem:[%s220 + $0x470] sm:$0xff]
      %v533 = vld [vmem:[%s220 + $0x478] sm:$0xff]
      %v534 = vld [vmem:[%s220 + $0x480] sm:$0xff]
      %v535 = vld [vmem:[%s220 + $0x488] sm:$0xff]
      %v536 = vld [vmem:[%s220 + $0x490] sm:$0xff]
      %v537 = vld [vmem:[%s220 + $0x498] sm:$0xff]
      %v538 = vld [vmem:[%s220 + $0x4a0] sm:$0xff]
      %v539 = vld [vmem:[%s220 + $0x4a8] sm:$0xff]
      %v540 = vld [vmem:[%s220 + $0x4b0] sm:$0xff]
      %v541 = vld [vmem:[%s220 + $0x4b8] sm:$0xff]
      %v542 = vadd.f32 %v238, %v390
      %v543 = vadd.f32 %v239, %v391
      %v544 = vadd.f32 %v240, %v392
      %v545 = vadd.f32 %v241, %v393
      %v546 = vadd.f32 %v242, %v394
      %v547 = vadd.f32 %v243, %v395
      %v548 = vadd.f32 %v244, %v396
      %v549 = vadd.f32 %v245, %v397
      %v550 = vadd.f32 %v246, %v398
      %v551 = vadd.f32 %v247, %v399
      %v552 = vadd.f32 %v248, %v400
      %v553 = vadd.f32 %v249, %v401
      %v554 = vadd.f32 %v250, %v402
      %v555 = vadd.f32 %v251, %v403
      %v556 = vadd.f32 %v252, %v404
      %v557 = vadd.f32 %v253, %v405
      %v558 = vadd.f32 %v254, %v406
      %v559 = vadd.f32 %v255, %v407
      %v560 = vadd.f32 %v256, %v408
      %v561 = vadd.f32 %v257, %v409
      %v562 = vadd.f32 %v258, %v410
      %v563 = vadd.f32 %v259, %v411
      %v564 = vadd.f32 %v260, %v412
      %v565 = vadd.f32 %v261, %v413
      %v566 = vadd.f32 %v262, %v414
      %v567 = vadd.f32 %v263, %v415
      %v568 = vadd.f32 %v264, %v416
      %v569 = vadd.f32 %v265, %v417
      %v570 = vadd.f32 %v266, %v418
      %v571 = vadd.f32 %v267, %v419
      %v572 = vadd.f32 %v268, %v420
      %v573 = vadd.f32 %v269, %v421
      %v574 = vadd.f32 %v270, %v422
      %v575 = vadd.f32 %v271, %v423
      %v576 = vadd.f32 %v272, %v424
      %v577 = vadd.f32 %v273, %v425
      %v578 = vadd.f32 %v274, %v426
      %v579 = vadd.f32 %v275, %v427
      %v580 = vadd.f32 %v276, %v428
      %v581 = vadd.f32 %v277, %v429
      %v582 = vadd.f32 %v278, %v430
      %v583 = vadd.f32 %v279, %v431
      %v584 = vadd.f32 %v280, %v432
      %v585 = vadd.f32 %v281, %v433
      %v586 = vadd.f32 %v282, %v434
      %v587 = vadd.f32 %v283, %v435
      %v588 = vadd.f32 %v284, %v436
      %v589 = vadd.f32 %v285, %v437
      %v590 = vadd.f32 %v286, %v438
      %v591 = vadd.f32 %v287, %v439
      %v592 = vadd.f32 %v288, %v440
      %v593 = vadd.f32 %v289, %v441
      %v594 = vadd.f32 %v290, %v442
      %v595 = vadd.f32 %v291, %v443
      %v596 = vadd.f32 %v292, %v444
      %v597 = vadd.f32 %v293, %v445
      %v598 = vadd.f32 %v294, %v446
      %v599 = vadd.f32 %v295, %v447
      %v600 = vadd.f32 %v296, %v448
      %v601 = vadd.f32 %v297, %v449
      %v602 = vadd.f32 %v298, %v450
      %v603 = vadd.f32 %v299, %v451
      %v604 = vadd.f32 %v300, %v452
      %v605 = vadd.f32 %v301, %v453
      %v606 = vadd.f32 %v302, %v454
      %v607 = vadd.f32 %v303, %v455
      %v608 = vadd.f32 %v304, %v456
      %v609 = vadd.f32 %v305, %v457
      %v610 = vadd.f32 %v306, %v458
      %v611 = vadd.f32 %v307, %v459
      %v612 = vadd.f32 %v308, %v460
      %v613 = vadd.f32 %v309, %v461
      %v614 = vadd.f32 %v310, %v462
      %v615 = vadd.f32 %v311, %v463
      %v616 = vadd.f32 %v312, %v464
      %v617 = vadd.f32 %v313, %v465
      %v618 = vadd.f32 %v314, %v466
      %v619 = vadd.f32 %v315, %v467
      %v620 = vadd.f32 %v316, %v468
      %v621 = vadd.f32 %v317, %v469
      %v622 = vadd.f32 %v318, %v470
      %v623 = vadd.f32 %v319, %v471
      %v624 = vadd.f32 %v320, %v472
      %v625 = vadd.f32 %v321, %v473
      %v626 = vadd.f32 %v322, %v474
      %v627 = vadd.f32 %v323, %v475
      %v628 = vadd.f32 %v324, %v476
      %v629 = vadd.f32 %v325, %v477
      %v630 = vadd.f32 %v326, %v478
      %v631 = vadd.f32 %v327, %v479
      %v632 = vadd.f32 %v328, %v480
      %v633 = vadd.f32 %v329, %v481
      %v634 = vadd.f32 %v330, %v482
      %v635 = vadd.f32 %v331, %v483
      %v636 = vadd.f32 %v332, %v484
      %v637 = vadd.f32 %v333, %v485
      %v638 = vadd.f32 %v334, %v486
      %v639 = vadd.f32 %v335, %v487
      %v640 = vadd.f32 %v336, %v488
      %v641 = vadd.f32 %v337, %v489
      %v642 = vadd.f32 %v338, %v490
      %v643 = vadd.f32 %v339, %v491
      %v644 = vadd.f32 %v340, %v492
      %v645 = vadd.f32 %v341, %v493
      %v646 = vadd.f32 %v342, %v494
      %v647 = vadd.f32 %v343, %v495
      %v648 = vadd.f32 %v344, %v496
      %v649 = vadd.f32 %v345, %v497
      %v650 = vadd.f32 %v346, %v498
      %v651 = vadd.f32 %v347, %v499
      %v652 = vadd.f32 %v348, %v500
      %v653 = vadd.f32 %v349, %v501
      %v654 = vadd.f32 %v350, %v502
      %v655 = vadd.f32 %v351, %v503
      %v656 = vadd.f32 %v352, %v504
      %v657 = vadd.f32 %v353, %v505
      %v658 = vadd.f32 %v354, %v506
      %v659 = vadd.f32 %v355, %v507
      %v660 = vadd.f32 %v356, %v508
      %v661 = vadd.f32 %v357, %v509
      %v662 = vadd.f32 %v358, %v510
      %v663 = vadd.f32 %v359, %v511
      %v664 = vadd.f32 %v360, %v512
      %v665 = vadd.f32 %v361, %v513
      %v666 = vadd.f32 %v362, %v514
      %v667 = vadd.f32 %v363, %v515
      %v668 = vadd.f32 %v364, %v516
      %v669 = vadd.f32 %v365, %v517
      %v670 = vadd.f32 %v366, %v518
      %v671 = vadd.f32 %v367, %v519
      %v672 = vadd.f32 %v368, %v520
      %v673 = vadd.f32 %v369, %v521
      %v674 = vadd.f32 %v370, %v522
      %v675 = vadd.f32 %v371, %v523
      %v676 = vadd.f32 %v372, %v524
      %v677 = vadd.f32 %v373, %v525
      %v678 = vadd.f32 %v374, %v526
      %v679 = vadd.f32 %v375, %v527
      %v680 = vadd.f32 %v376, %v528
      %v681 = vadd.f32 %v377, %v529
      %v682 = vadd.f32 %v378, %v530
      %v683 = vadd.f32 %v379, %v531
      %v684 = vadd.f32 %v380, %v532
      %v685 = vadd.f32 %v381, %v533
      %v686 = vadd.f32 %v382, %v534
      %v687 = vadd.f32 %v383, %v535
      %v688 = vadd.f32 %v384, %v536
      %v689 = vadd.f32 %v385, %v537
      %v690 = vadd.f32 %v386, %v538
      %v691 = vadd.f32 %v387, %v539
      %v692 = vadd.f32 %v388, %v540
      %v693 = vadd.f32 %v389, %v541
      %694 = vst [vmem:[%s236] sm:$0xff] %v542
      %695 = vst [vmem:[%s236 + $0x8] sm:$0xff] %v543
      %696 = vst [vmem:[%s236 + $0x10] sm:$0xff] %v544
      %697 = vst [vmem:[%s236 + $0x18] sm:$0xff] %v545
      %698 = vst [vmem:[%s236 + $0x20] sm:$0xff] %v546
      %699 = vst [vmem:[%s236 + $0x28] sm:$0xff] %v547
      %700 = vst [vmem:[%s236 + $0x30] sm:$0xff] %v548
      %701 = vst [vmem:[%s236 + $0x38] sm:$0xff] %v549
      %702 = vst [vmem:[%s236 + $0x40] sm:$0xff] %v550
      %703 = vst [vmem:[%s236 + $0x48] sm:$0xff] %v551
      %704 = vst [vmem:[%s236 + $0x50] sm:$0xff] %v552
      %705 = vst [vmem:[%s236 + $0x58] sm:$0xff] %v553
      %706 = vst [vmem:[%s236 + $0x60] sm:$0xff] %v554
      %707 = vst [vmem:[%s236 + $0x68] sm:$0xff] %v555
      %708 = vst [vmem:[%s236 + $0x70] sm:$0xff] %v556
      %709 = vst [vmem:[%s236 + $0x78] sm:$0xff] %v557
      %710 = vst [vmem:[%s236 + $0x80] sm:$0xff] %v558
      %711 = vst [vmem:[%s236 + $0x88] sm:$0xff] %v559
      %712 = vst [vmem:[%s236 + $0x90] sm:$0xff] %v560
      %713 = vst [vmem:[%s236 + $0x98] sm:$0xff] %v561
      %714 = vst [vmem:[%s236 + $0xa0] sm:$0xff] %v562
      %715 = vst [vmem:[%s236 + $0xa8] sm:$0xff] %v563
      %716 = vst [vmem:[%s236 + $0xb0] sm:$0xff] %v564
      %717 = vst [vmem:[%s236 + $0xb8] sm:$0xff] %v565
      %718 = vst [vmem:[%s236 + $0xc0] sm:$0xff] %v566
      %719 = vst [vmem:[%s236 + $0xc8] sm:$0xff] %v567
      %720 = vst [vmem:[%s236 + $0xd0] sm:$0xff] %v568
      %721 = vst [vmem:[%s236 + $0xd8] sm:$0xff] %v569
      %722 = vst [vmem:[%s236 + $0xe0] sm:$0xff] %v570
      %723 = vst [vmem:[%s236 + $0xe8] sm:$0xff] %v571
      %724 = vst [vmem:[%s236 + $0xf0] sm:$0xff] %v572
      %725 = vst [vmem:[%s236 + $0xf8] sm:$0xff] %v573
      %726 = vst [vmem:[%s236 + $0x100] sm:$0xff] %v574
      %727 = vst [vmem:[%s236 + $0x108] sm:$0xff] %v575
      %728 = vst [vmem:[%s236 + $0x110] sm:$0xff] %v576
      %729 = vst [vmem:[%s236 + $0x118] sm:$0xff] %v577
      %730 = vst [vmem:[%s236 + $0x120] sm:$0xff] %v578
      %731 = vst [vmem:[%s236 + $0x128] sm:$0xff] %v579
      %732 = vst [vmem:[%s236 + $0x130] sm:$0xff] %v580
      %733 = vst [vmem:[%s236 + $0x138] sm:$0xff] %v581
      %734 = vst [vmem:[%s236 + $0x140] sm:$0xff] %v582
      %735 = vst [vmem:[%s236 + $0x148] sm:$0xff] %v583
      %736 = vst [vmem:[%s236 + $0x150] sm:$0xff] %v584
      %737 = vst [vmem:[%s236 + $0x158] sm:$0xff] %v585
      %738 = vst [vmem:[%s236 + $0x160] sm:$0xff] %v586
      %739 = vst [vmem:[%s236 + $0x168] sm:$0xff] %v587
      %740 = vst [vmem:[%s236 + $0x170] sm:$0xff] %v588
      %741 = vst [vmem:[%s236 + $0x178] sm:$0xff] %v589
      %742 = vst [vmem:[%s236 + $0x180] sm:$0xff] %v590
      %743 = vst [vmem:[%s236 + $0x188] sm:$0xff] %v591
      %744 = vst [vmem:[%s236 + $0x190] sm:$0xff] %v592
      %745 = vst [vmem:[%s236 + $0x198] sm:$0xff] %v593
      %746 = vst [vmem:[%s236 + $0x1a0] sm:$0xff] %v594
      %747 = vst [vmem:[%s236 + $0x1a8] sm:$0xff] %v595
      %748 = vst [vmem:[%s236 + $0x1b0] sm:$0xff] %v596
      %749 = vst [vmem:[%s236 + $0x1b8] sm:$0xff] %v597
      %750 = vst [vmem:[%s236 + $0x1c0] sm:$0xff] %v598
      %751 = vst [vmem:[%s236 + $0x1c8] sm:$0xff] %v599
      %752 = vst [vmem:[%s236 + $0x1d0] sm:$0xff] %v600
      %753 = vst [vmem:[%s236 + $0x1d8] sm:$0xff] %v601
      %754 = vst [vmem:[%s236 + $0x1e0] sm:$0xff] %v602
      %755 = vst [vmem:[%s236 + $0x1e8] sm:$0xff] %v603
      %756 = vst [vmem:[%s236 + $0x1f0] sm:$0xff] %v604
      %757 = vst [vmem:[%s236 + $0x1f8] sm:$0xff] %v605
      %758 = vst [vmem:[%s236 + $0x200] sm:$0xff] %v606
      %759 = vst [vmem:[%s236 + $0x208] sm:$0xff] %v607
      %760 = vst [vmem:[%s236 + $0x210] sm:$0xff] %v608
      %761 = vst [vmem:[%s236 + $0x218] sm:$0xff] %v609
      %762 = vst [vmem:[%s236 + $0x220] sm:$0xff] %v610
      %763 = vst [vmem:[%s236 + $0x228] sm:$0xff] %v611
      %764 = vst [vmem:[%s236 + $0x230] sm:$0xff] %v612
      %765 = vst [vmem:[%s236 + $0x238] sm:$0xff] %v613
      %766 = vst [vmem:[%s236 + $0x240] sm:$0xff] %v614
      %767 = vst [vmem:[%s236 + $0x248] sm:$0xff] %v615
      %768 = vst [vmem:[%s236 + $0x250] sm:$0xff] %v616
      %769 = vst [vmem:[%s236 + $0x258] sm:$0xff] %v617
      %770 = vst [vmem:[%s236 + $0x260] sm:$0xff] %v618
      %771 = vst [vmem:[%s236 + $0x268] sm:$0xff] %v619
      %772 = vst [vmem:[%s236 + $0x270] sm:$0xff] %v620
      %773 = vst [vmem:[%s236 + $0x278] sm:$0xff] %v621
      %774 = vst [vmem:[%s236 + $0x280] sm:$0xff] %v622
      %775 = vst [vmem:[%s236 + $0x288] sm:$0xff] %v623
      %776 = vst [vmem:[%s236 + $0x290] sm:$0xff] %v624
      %777 = vst [vmem:[%s236 + $0x298] sm:$0xff] %v625
      %778 = vst [vmem:[%s236 + $0x2a0] sm:$0xff] %v626
      %779 = vst [vmem:[%s236 + $0x2a8] sm:$0xff] %v627
      %780 = vst [vmem:[%s236 + $0x2b0] sm:$0xff] %v628
      %781 = vst [vmem:[%s236 + $0x2b8] sm:$0xff] %v629
      %782 = vst [vmem:[%s236 + $0x2c0] sm:$0xff] %v630
      %783 = vst [vmem:[%s236 + $0x2c8] sm:$0xff] %v631
      %784 = vst [vmem:[%s236 + $0x2d0] sm:$0xff] %v632
      %785 = vst [vmem:[%s236 + $0x2d8] sm:$0xff] %v633
      %786 = vst [vmem:[%s236 + $0x2e0] sm:$0xff] %v634
      %787 = vst [vmem:[%s236 + $0x2e8] sm:$0xff] %v635
      %788 = vst [vmem:[%s236 + $0x2f0] sm:$0xff] %v636
      %789 = vst [vmem:[%s236 + $0x2f8] sm:$0xff] %v637
      %790 = vst [vmem:[%s236 + $0x300] sm:$0xff] %v638
      %791 = vst [vmem:[%s236 + $0x308] sm:$0xff] %v639
      %792 = vst [vmem:[%s236 + $0x310] sm:$0xff] %v640
      %793 = vst [vmem:[%s236 + $0x318] sm:$0xff] %v641
      %794 = vst [vmem:[%s236 + $0x320] sm:$0xff] %v642
      %795 = vst [vmem:[%s236 + $0x328] sm:$0xff] %v643
      %796 = vst [vmem:[%s236 + $0x330] sm:$0xff] %v644
      %797 = vst [vmem:[%s236 + $0x338] sm:$0xff] %v645
      %798 = vst [vmem:[%s236 + $0x340] sm:$0xff] %v646
      %799 = vst [vmem:[%s236 + $0x348] sm:$0xff] %v647
      %800 = vst [vmem:[%s236 + $0x350] sm:$0xff] %v648
      %801 = vst [vmem:[%s236 + $0x358] sm:$0xff] %v649
      %802 = vst [vmem:[%s236 + $0x360] sm:$0xff] %v650
      %803 = vst [vmem:[%s236 + $0x368] sm:$0xff] %v651
      %804 = vst [vmem:[%s236 + $0x370] sm:$0xff] %v652
      %805 = vst [vmem:[%s236 + $0x378] sm:$0xff] %v653
      %806 = vst [vmem:[%s236 + $0x380] sm:$0xff] %v654
      %807 = vst [vmem:[%s236 + $0x388] sm:$0xff] %v655
      %808 = vst [vmem:[%s236 + $0x390] sm:$0xff] %v656
      %809 = vst [vmem:[%s236 + $0x398] sm:$0xff] %v657
      %810 = vst [vmem:[%s236 + $0x3a0] sm:$0xff] %v658
      %811 = vst [vmem:[%s236 + $0x3a8] sm:$0xff] %v659
      %812 = vst [vmem:[%s236 + $0x3b0] sm:$0xff] %v660
      %813 = vst [vmem:[%s236 + $0x3b8] sm:$0xff] %v661
      %814 = vst [vmem:[%s236 + $0x3c0] sm:$0xff] %v662
      %815 = vst [vmem:[%s236 + $0x3c8] sm:$0xff] %v663
      %816 = vst [vmem:[%s236 + $0x3d0] sm:$0xff] %v664
      %817 = vst [vmem:[%s236 + $0x3d8] sm:$0xff] %v665
      %818 = vst [vmem:[%s236 + $0x3e0] sm:$0xff] %v666
      %819 = vst [vmem:[%s236 + $0x3e8] sm:$0xff] %v667
      %820 = vst [vmem:[%s236 + $0x3f0] sm:$0xff] %v668
      %821 = vst [vmem:[%s236 + $0x3f8] sm:$0xff] %v669
      %822 = vst [vmem:[%s236 + $0x400] sm:$0xff] %v670
      %823 = vst [vmem:[%s236 + $0x408] sm:$0xff] %v671
      %824 = vst [vmem:[%s236 + $0x410] sm:$0xff] %v672
      %825 = vst [vmem:[%s236 + $0x418] sm:$0xff] %v673
      %826 = vst [vmem:[%s236 + $0x420] sm:$0xff] %v674
      %827 = vst [vmem:[%s236 + $0x428] sm:$0xff] %v675
      %828 = vst [vmem:[%s236 + $0x430] sm:$0xff] %v676
      %829 = vst [vmem:[%s236 + $0x438] sm:$0xff] %v677
      %830 = vst [vmem:[%s236 + $0x440] sm:$0xff] %v678
      %831 = vst [vmem:[%s236 + $0x448] sm:$0xff] %v679
      %832 = vst [vmem:[%s236 + $0x450] sm:$0xff] %v680
      %833 = vst [vmem:[%s236 + $0x458] sm:$0xff] %v681
      %834 = vst [vmem:[%s236 + $0x460] sm:$0xff] %v682
      %835 = vst [vmem:[%s236 + $0x468] sm:$0xff] %v683
      %836 = vst [vmem:[%s236 + $0x470] sm:$0xff] %v684
      %837 = vst [vmem:[%s236 + $0x478] sm:$0xff] %v685
      %838 = vst [vmem:[%s236 + $0x480] sm:$0xff] %v686
      %839 = vst [vmem:[%s236 + $0x488] sm:$0xff] %v687
      %840 = vst [vmem:[%s236 + $0x490] sm:$0xff] %v688
      %841 = vst [vmem:[%s236 + $0x498] sm:$0xff] %v689
      %842 = vst [vmem:[%s236 + $0x4a0] sm:$0xff] %v690
      %843 = vst [vmem:[%s236 + $0x4a8] sm:$0xff] %v691
      %844 = vst [vmem:[%s236 + $0x4b0] sm:$0xff] %v692
      %845 = vst [vmem:[%s236 + $0x4b8] sm:$0xff] %v693
      %s846 = smul.u32 38, %s17
      %p847 = scmp.lt.s32.totalorder %s18, 1
      %s848 = scalar_select %p847, %s18, 1
      %p849 = scmp.lt.s32.totalorder %s846, 37
      %s850 = scalar_select %p849, %s846, 37
      %s851 = smul.addr %s850, 4
      %s852 = smul.addr %s848, 152
      %s853 = sadd.s32 %s851, %s852
      %s854 = smul.addr %s853, 8
      %s855 = scalar_lea.vmem %s2, %s854
      // Predicated region
      $region29: #{positional_encoding_forward.1} parent=27 // pred_check
        %p856 = pneg %p99
      $region30: #{positional_encoding_forward.1} parent=27 // pred_check_branch
        %858 = sbr.rel (%p856) target = $region32
      $region31: #{positional_encoding_forward.1} parent=27 // pred_region
        %s859 = smul.u32 38, %s17
      $region32: #{positional_encoding_forward.1} parent=27 // pred_fallthru
        _
    $region28: #{positional_encoding_forward.1} parent=5 // pred_fallthru
      _
    %p860 = scmp.le.s32.totalorder 2, %s8
    // Predicated region
    $region33: #{positional_encoding_forward.1} parent=5 // pred_check
      %p861 = pneg %p860
    $region34: #{positional_encoding_forward.1} parent=5 // pred_check_branch
      %863 = sbr.rel (%p861) target = $region36
    $region35: #{positional_encoding_forward.1} parent=5 // pred_region
      %s864 = ssub.s32 %s8, 2
      // Predicated region
      $region37: #{positional_encoding_forward.1} parent=35 // pred_check
        %p865 = pneg %p105
      $region38: #{positional_encoding_forward.1} parent=35 // pred_check_branch
        %867 = sbr.rel (%p865) target = $region40
      $region39: #{positional_encoding_forward.1} parent=35 // pred_region
        %s868 = smul.u32 38, %s19
        %p869 = scmp.lt.s32.totalorder %s20, 1
        %s870 = scalar_select %p869, %s20, 1
        %p871 = scmp.lt.s32.totalorder %s868, 37
        %s872 = scalar_select %p871, %s868, 37
        %s873 = smul.addr %s872, 4
        %s874 = smul.addr %s870, 152
        %s875 = sadd.s32 %s873, %s874
        %s876 = smul.addr %s875, 8
        %s877 = scalar_lea.vmem %s2, %s876
      $region40: #{positional_encoding_forward.1} parent=35 // pred_fallthru
        _
    $region36: #{positional_encoding_forward.1} parent=5 // pred_fallthru
      _
  $region6: #{positional_encoding_forward.1} parent=0 // loop_footer
    %s12 = sadd.s32 1, %s8
  $region7: #{positional_encoding_forward.1} parent=0 // loop_footer_branch
    %7 = sbr.rel target = $region3
  $region8: #{positional_encoding_forward.1} parent=0 // loop_exit
    _

</llo_original>
